<compile_context>
chip_gen: v7x
topology: tpu7x:2x2x1
jax: 0.10.0
libtpu: 0.0.40
codegen_flags: <defaults>
</compile_context>

<pallas_src>
import math

import numpy as np
import jax
import jax.numpy as jnp
from jax import lax
from jax.experimental import pallas as pl
from jax.experimental.pallas import tpu as pltpu

LN_EPS = 1e-5  # nn.LayerNorm default


def _layernorm(x, gamma, beta):
    mu = jnp.mean(x, axis=-1, keepdims=True)
    var = jnp.mean(jnp.square(x - mu), axis=-1, keepdims=True)
    return (x - mu) * lax.rsqrt(var + LN_EPS) * gamma + beta


def encoder_kernel(w_ref, sab_ref,                       # scalar prefetch (SMEM)
                   hidden_ref, mask_ref, scat_ref,
                   eln_g_ref, eln_b_ref, sa_w_ref,
                   pln_g_ref, pln_b_ref, qg_w_ref, qg_b_ref,
                   enc_out_ref, dec_out_ref,
                   acc_ref):
    l = pl.program_id(1)
    n_layers = pl.num_programs(1)

    # ---- layer reduction: enc += softmax(scores)[l] * LayerNorm(h_l) ---------
    # Layer weight folded into the LN gamma; beta is added once in the epilogue
    # (softmax weights sum to 1), saving VPU work in the memory/VALU-bound loop.
    h = hidden_ref[0, 0].astype(jnp.float32)             # (S, D) bf16 -> f32
    mu = jnp.mean(h, axis=-1, keepdims=True)
    var = jnp.mean(jnp.square(h - mu), axis=-1, keepdims=True)
    g_l = w_ref[l] * eln_g_ref[0]                        # (D,) folded gamma
    hn = (h - mu) * lax.rsqrt(var + LN_EPS) * g_l

    @pl.when(l == 0)
    def _():
        acc_ref[...] = jnp.zeros_like(acc_ref)

    acc_ref[...] += hn

    # ---- epilogue: once per batch element, after the last layer --------------
    # NOTE: outputs are written only here.  This relies on the out index_maps
    # being invariant along the (innermost, "arbitrary") layer axis, so the
    # block written at l == L-1 is the one flushed to HBM.  Keep L innermost.
    @pl.when(l == n_layers - 1)
    def _():
        enc = acc_ref[...] + eln_b_ref[0]                 # restore LN beta
        # encoded.masked_fill(mask == 0, 0.0)
        enc = jnp.where(mask_ref[0] == 0.0, 0.0, enc)     # mask (S, 1) over D

        # subword-attention logits on the VPU: mul + lane reduction.  Avoids a
        # 1-row MXU matmul and any transpose of the (S, D) tile.
        D = enc.shape[-1]
        logit = (jnp.sum(enc * sa_w_ref[...], axis=-1, keepdims=True)
                 + sab_ref[0]) * jnp.float32(1.0 / math.sqrt(D))   # (S, 1)

        # Masked softmax over subwords, refactored so normalisation happens
        # after the contraction (per-word max shift cancels algebraically):
        #   out[w] = (sum_s scat[w,s] p[s] enc[s]) / (sum_s scat[w,s] p[s])
        # Fully-empty words give num == 0 (zero scat row) -> 0 output row,
        # matching masked_fill(to_scatter.sum(1) == 0, 0.0).
        m = jnp.max(logit, axis=0, keepdims=True)          # (1, 1)
        p = jnp.exp(logit - m)                             # (S, 1), in (0, 1]

        scat = scat_ref[0]                                 # (W, S) bf16 0/1
        pe = (p * enc).astype(jnp.bfloat16)                # (S, D)
        num = jnp.dot(scat, pe, preferred_element_type=jnp.float32)   # (W, D)
        den = jnp.dot(scat.astype(jnp.float32), p,
                      preferred_element_type=jnp.float32)             # (W, 1)
        inv = pl.reciprocal(jnp.where(den == 0.0, 1.0, den), approx=True)
        out = num * inv                                    # (W, D)

        # post_layer_norm
        out = _layernorm(out, pln_g_ref[0], pln_b_ref[0])
        enc_out_ref[0] = out

        # query_generator: Linear(D, D * width_factor); bf16 MXU, f32 accumulate
        dec = (jnp.dot(out.astype(jnp.bfloat16), qg_w_ref[...],
                       preferred_element_type=jnp.float32)
               + qg_b_ref[0])                              # (W, D*Q)
        dec_out_ref[0] = dec


def _ceil_to(x, m):
    return -(-x // m) * m


def _padded_nbytes(block_shape, dtype):
    """VMEM bytes for a block, last two dims padded to the (8, 128) vreg tile."""
    dims = list(block_shape)
    if len(dims) >= 1:
        dims[-1] = _ceil_to(dims[-1], 128)
    if len(dims) >= 2:
        dims[-2] = _ceil_to(dims[-2], 8)
    n = 1
    for d in dims:
        n *= d
    return n * jnp.dtype(dtype).itemsize


def encoder_forward(hidden_lbsd, mask, to_scatter, params):
    """hidden_lbsd: (L, B, S, D) bf16/f32 (stacked BERT hidden_states[1:]),
       mask: (B, S) {0,1}, to_scatter: (B, S, W) {0,1}."""
    L, B, S, D = hidden_lbsd.shape
    W = to_scatter.shape[-1]
    DQ = params["qg_w"].shape[-1]
    Q = DQ // D

    # Batch-invariant scalars, precomputed once and scalar-prefetched into SMEM.
    w_soft = jax.nn.softmax(params["scores"].reshape(L).astype(jnp.float32))
    sa_bias = params["sa_b"].reshape(1).astype(jnp.float32)

    mask_f = mask.astype(jnp.float32)[:, :, None]                        # (B, S, 1)
    # to_scatter^T with subwords lane-dense; 0/1 so bf16 is exact, halves HBM.
    scat_t = jnp.transpose(to_scatter, (0, 2, 1)).astype(jnp.bfloat16)   # (B, W, S)
    # query_generator weight in bf16: halves VMEM residency and HBM traffic.
    # (Grid-invariant index_map -> fetched once; only the double-buffer
    #  allocation remains, now half-size.)
    qg_w_b = params["qg_w"].astype(jnp.bfloat16)

    # ---- explicit scoped-VMEM budget (default is 16 MiB v5e / 32 MiB v6e/v7x)
    in_blocks = [
        ((1, 1, S, D), hidden_lbsd.dtype),
        ((1, S, 1), jnp.float32),
        ((1, W, S), jnp.bfloat16),
        ((1, D), jnp.float32), ((1, D), jnp.float32), ((1, D), jnp.float32),
        ((1, D), jnp.float32), ((1, D), jnp.float32),
        ((D, DQ), jnp.bfloat16), ((1, DQ), jnp.float32),
    ]
    out_blocks = [((1, W, D), jnp.float32), ((1, W, DQ), jnp.float32)]
    vmem_need = sum(2 * _padded_nbytes(s, d) for s, d in in_blocks + out_blocks)
    vmem_need += _padded_nbytes((S, D), jnp.float32)                 # accumulator
    vmem_limit = int(min(max(2 * vmem_need + (8 << 20), 32 << 20), 64 << 20))

    cost = pl.CostEstimate(
        flops=int(2 * B * (W * S * D + W * D * DQ + S * D) + 8 * L * B * S * D),
        transcendentals=int(B * (L * S + S + W)),
        bytes_accessed=int(L * B * S * D * jnp.dtype(hidden_lbsd.dtype).itemsize
                           + B * W * S * 2 + B * S * 4 + D * DQ * 2
                           + B * W * D * 4 + B * W * DQ * 4 + 8 * D * 4))

    grid_spec = pltpu.PrefetchScalarGridSpec(
        num_scalar_prefetch=2,
        grid=(B, L),           # layer axis innermost: it is the reduction axis
        in_specs=[
            # hidden stays (L, B, S, D) in HBM; pick the (l, b) tile here.
            pl.BlockSpec((1, 1, S, D), lambda b, l, ws, sb: (l, b, 0, 0)),
            pl.BlockSpec((1, S, 1),    lambda b, l, ws, sb: (b, 0, 0)),   # mask
            pl.BlockSpec((1, W, S),    lambda b, l, ws, sb: (b, 0, 0)),   # to_scatter^T
            pl.BlockSpec((1, D),       lambda b, l, ws, sb: (0, 0)),      # encoded LN gamma
            pl.BlockSpec((1, D),       lambda b, l, ws, sb: (0, 0)),      # encoded LN beta
            pl.BlockSpec((1, D),       lambda b, l, ws, sb: (0, 0)),      # subword attn W
            pl.BlockSpec((1, D),       lambda b, l, ws, sb: (0, 0)),      # post LN gamma
            pl.BlockSpec((1, D),       lambda b, l, ws, sb: (0, 0)),      # post LN beta
            pl.BlockSpec((D, DQ),      lambda b, l, ws, sb: (0, 0)),      # query_generator W (bf16)
            pl.BlockSpec((1, DQ),      lambda b, l, ws, sb: (0, 0)),      # query_generator b
        ],
        out_specs=[
            pl.BlockSpec((1, W, D),  lambda b, l, ws, sb: (b, 0, 0)),
            pl.BlockSpec((1, W, DQ), lambda b, l, ws, sb: (b, 0, 0)),
        ],
        scratch_shapes=[pltpu.VMEM((S, D), jnp.float32)],   # layer-sum accumulator
    )

    enc_out, dec_raw = pl.pallas_call(
        encoder_kernel,
        grid_spec=grid_spec,
        out_shape=(jax.ShapeDtypeStruct((B, W, D), jnp.float32),
                   jax.ShapeDtypeStruct((B, W, DQ), jnp.float32)),
        compiler_params=pltpu.CompilerParams(
            dimension_semantics=("parallel", "arbitrary"),
            vmem_limit_bytes=vmem_limit),
        cost_estimate=cost,
    )(w_soft, sa_bias,
      hidden_lbsd, mask_f, scat_t,
      params["eln_g"], params["eln_b"], params["sa_w"],
      params["pln_g"], params["pln_b"],
      qg_w_b, params["qg_b"])

    # decoder_input.view(B, -1, Q, D).flatten(1, 2)
    dec = dec_raw.reshape(B, W, Q, D).reshape(B, W * Q, D)
    return enc_out, dec


def reference_forward(hidden_lbsd, mask, to_scatter, params):
    """Plain-JAX f32 replica of the PyTorch eval-mode forward (for verification)."""
    L, B, S, D = hidden_lbsd.shape
    W = to_scatter.shape[-1]
    DQ = params["qg_w"].shape[-1]
    Q = DQ // D
    neg_inf = jnp.float32(-jnp.inf)

    hn = _layernorm(hidden_lbsd.astype(jnp.float32),
                    params["eln_g"][0], params["eln_b"][0])           # (L,B,S,D)
    w = jax.nn.softmax(params["scores"].reshape(L).astype(jnp.float32), axis=0)
    enc = jnp.einsum("l,lbsd->bsd", w, hn)
    enc = jnp.where(mask[:, :, None] == 0, 0.0, enc)

    att = (enc @ params["sa_w"].reshape(D, 1)
           + params["sa_b"].reshape(())) / math.sqrt(D)               # (B,S,1)
    scat = to_scatter.astype(jnp.float32)
    att = jnp.where(scat == 0.0, neg_inf, jnp.broadcast_to(att, scat.shape))
    amax = jnp.max(att, axis=1, keepdims=True)
    amax = jnp.where(amax == neg_inf, 0.0, amax)
    ae = jnp.exp(att - amax)
    den = jnp.sum(ae, axis=1, keepdims=True)
    att = ae / jnp.where(den == 0.0, 1.0, den)
    att = jnp.where(jnp.sum(scat, axis=1, keepdims=True) == 0.0, 0.0, att)

    out = jnp.einsum("bsd,bsw->bwd", enc, att)
    out = _layernorm(out, params["pln_g"][0], params["pln_b"][0])
    dec = out @ params["qg_w"] + params["qg_b"][0]
    dec = dec.reshape(B, W, Q, D).reshape(B, W * Q, D)
    return out, dec


if __name__ == "__main__":
    # Small synthetic shapes: n_encoder_layers L=3, batch B=2, subwords S=8,
    # words W=4, hidden_size D=32, query_length (width_factor) Q=2.
    L, B, S, W, D, Q = 3, 2, 8, 4, 32, 2

    key = jax.random.PRNGKey(0)
    k_h, k_sw, k_qw = jax.random.split(key, 3)

    # BERT hidden states live in HBM as bf16 (halves the dominant HBM stream);
    # both kernel and reference consume the same bf16 tensor.
    hidden = jax.random.normal(k_h, (L, B, S, D), dtype=jnp.float32).astype(jnp.bfloat16)

    mask_np = np.ones((B, S), np.float32)
    mask_np[1, 6:] = 0.0                         # batch 1 has 2 padded subwords
    mask = jnp.asarray(mask_np)

    scat_np = np.zeros((B, S, W), np.float32)    # subword -> word assignment
    for wi in range(W):                          # batch 0: 4 words x 2 subwords
        scat_np[0, 2 * wi, wi] = 1.0
        scat_np[0, 2 * wi + 1, wi] = 1.0
    for wi in range(3):                          # batch 1: 3 words, word 3 empty
        scat_np[1, 2 * wi, wi] = 1.0
        scat_np[1, 2 * wi + 1, wi] = 1.0
    to_scatter = jnp.asarray(scat_np)

    params = {
        "scores": jnp.zeros((L, 1, 1, 1), jnp.float32),     # nn.Parameter(zeros)
        "eln_g": jnp.ones((1, D), jnp.float32),
        "eln_b": jnp.zeros((1, D), jnp.float32),
        "sa_w": 0.05 * jax.random.normal(k_sw, (1, D), dtype=jnp.float32),
        "sa_b": jnp.full((1, 1), 0.01, jnp.float32),
        "pln_g": jnp.ones((1, D), jnp.float32),
        "pln_b": jnp.zeros((1, D), jnp.float32),
        "qg_w": 0.05 * jax.random.normal(k_qw, (D, D * Q), dtype=jnp.float32),
        "qg_b": jnp.zeros((1, D * Q), jnp.float32),
    }

    enc_out, dec_in = encoder_forward(hidden, mask, to_scatter, params)
    jax.block_until_ready((enc_out, dec_in))

    ref_enc, ref_dec = reference_forward(hidden, mask, to_scatter, params)
    assert enc_out.shape == (B, W, D) and dec_in.shape == (B, W * Q, D)
    # 1e-2 tolerance covers bf16 MXU operands in the two epilogue matmuls and
    # pl.reciprocal(approx=True) in the subword softmax (reference is pure f32).
    assert np.allclose(np.asarray(enc_out), np.asarray(ref_enc), rtol=1e-2, atol=1e-2)
    assert np.allclose(np.asarray(dec_in), np.asarray(ref_dec), rtol=1e-2, atol=1e-2)

    print("KERNEL_OK")
</pallas_src>

<mosaic_0001>
module attributes {stable_mosaic.version = 11 : i64} {
  func.func @encoder_kernel(%arg0: i32, %arg1: i32, %arg2: memref<3xf32, #tpu.memory_space<smem>>, %arg3: memref<1xf32, #tpu.memory_space<smem>>, %arg4: memref<1x1x8x32xbf16, #tpu.memory_space<vmem>>, %arg5: memref<1x8x1xf32, #tpu.memory_space<vmem>>, %arg6: memref<1x4x8xbf16, #tpu.memory_space<vmem>>, %arg7: memref<1x32xf32, #tpu.memory_space<vmem>>, %arg8: memref<1x32xf32, #tpu.memory_space<vmem>>, %arg9: memref<1x32xf32, #tpu.memory_space<vmem>>, %arg10: memref<1x32xf32, #tpu.memory_space<vmem>>, %arg11: memref<1x32xf32, #tpu.memory_space<vmem>>, %arg12: memref<32x64xbf16, #tpu.memory_space<vmem>>, %arg13: memref<1x64xf32, #tpu.memory_space<vmem>>, %arg14: memref<1x4x32xf32, #tpu.memory_space<vmem>>, %arg15: memref<1x4x64xf32, #tpu.memory_space<vmem>>, %arg16: memref<8x32xf32, #tpu.memory_space<vmem>>) attributes {dimension_semantics = [#tpu.dimension_semantics<parallel>, #tpu.dimension_semantics<arbitrary>], iteration_bounds = array<i64: 2, 3>, scalar_prefetch = 2 : i64, scratch_operands = 1 : i64, tpu.core_type = #tpu.core_type<tc>, window_params = [{transform_indices = @transform_0, window_bounds = array<i64: 1, 1, 8, 32>}, {transform_indices = @transform_1, window_bounds = array<i64: 1, 8, 1>}, {transform_indices = @transform_2, window_bounds = array<i64: 1, 4, 8>}, {pipeline_mode = #tpu.pipeline_mode<synchronous>, transform_indices = @transform_3, window_bounds = array<i64: 1, 32>}, {pipeline_mode = #tpu.pipeline_mode<synchronous>, transform_indices = @transform_4, window_bounds = array<i64: 1, 32>}, {pipeline_mode = #tpu.pipeline_mode<synchronous>, transform_indices = @transform_5, window_bounds = array<i64: 1, 32>}, {pipeline_mode = #tpu.pipeline_mode<synchronous>, transform_indices = @transform_6, window_bounds = array<i64: 1, 32>}, {pipeline_mode = #tpu.pipeline_mode<synchronous>, transform_indices = @transform_7, window_bounds = array<i64: 1, 32>}, {pipeline_mode = #tpu.pipeline_mode<synchronous>, transform_indices = @transform_8, window_bounds = array<i64: 32, 64>}, {pipeline_mode = #tpu.pipeline_mode<synchronous>, transform_indices = @transform_9, window_bounds = array<i64: 1, 64>}, {transform_indices = @transform_10, window_bounds = array<i64: 1, 4, 32>}, {transform_indices = @transform_11, window_bounds = array<i64: 1, 4, 64>}]} {
    %c0 = arith.constant 0 : index
    %c0_0 = arith.constant 0 : index
    %c0_1 = arith.constant 0 : index
    %c0_2 = arith.constant 0 : index
    %0 = vector.load %arg4[%c0, %c0_0, %c0_1, %c0_2] : memref<1x1x8x32xbf16, #tpu.memory_space<vmem>>, vector<1x1x8x32xbf16>
    %1 = vector.shape_cast %0 : vector<1x1x8x32xbf16> to vector<8x32xbf16>
    %2 = arith.extf %1 : vector<8x32xbf16> to vector<8x32xf32>
    %cst = arith.constant dense<0.000000e+00> : vector<8xf32>
    %3 = vector.multi_reduction <add>, %2, %cst [1] : vector<8x32xf32> to vector<8xf32>
    %4 = vector.shape_cast %3 : vector<8xf32> to vector<8x1xf32>
    %cst_3 = arith.constant 3.200000e+01 : f32
    %5 = vector.broadcast %cst_3 : f32 to vector<8x1xf32>
    %6 = arith.divf %4, %5 : vector<8x1xf32>
    %7 = vector.broadcast %6 : vector<8x1xf32> to vector<8x32xf32>
    %8 = arith.subf %2, %7 : vector<8x32xf32>
    %9 = arith.mulf %8, %8 : vector<8x32xf32>
    %cst_4 = arith.constant dense<0.000000e+00> : vector<8xf32>
    %10 = vector.multi_reduction <add>, %9, %cst_4 [1] : vector<8x32xf32> to vector<8xf32>
    %11 = vector.shape_cast %10 : vector<8xf32> to vector<8x1xf32>
    %cst_5 = arith.constant 3.200000e+01 : f32
    %12 = vector.broadcast %cst_5 : f32 to vector<8x1xf32>
    %13 = arith.divf %11, %12 : vector<8x1xf32>
    %14 = arith.index_cast %arg1 : i32 to index
    %15 = memref.load %arg2[%14] : memref<3xf32, #tpu.memory_space<smem>>
    %c0_6 = arith.constant 0 : index
    %c0_7 = arith.constant 0 : index
    %16 = vector.load %arg7[%c0_6, %c0_7] : memref<1x32xf32, #tpu.memory_space<vmem>>, vector<1x32xf32>
    %17 = vector.shape_cast %16 : vector<1x32xf32> to vector<32xf32>
    %18 = vector.broadcast %15 : f32 to vector<32xf32>
    %19 = arith.mulf %18, %17 : vector<32xf32>
    %20 = vector.broadcast %6 : vector<8x1xf32> to vector<8x32xf32>
    %21 = arith.subf %2, %20 : vector<8x32xf32>
    %cst_8 = arith.constant 9.99999974E-6 : f32
    %22 = vector.broadcast %cst_8 : f32 to vector<8x1xf32>
    %23 = arith.addf %13, %22 : vector<8x1xf32>
    %24 = math.rsqrt %23 : vector<8x1xf32>
    %25 = vector.broadcast %24 : vector<8x1xf32> to vector<8x32xf32>
    %26 = arith.mulf %21, %25 : vector<8x32xf32>
    %27 = vector.shape_cast %19 : vector<32xf32> to vector<1x32xf32>
    %28 = vector.broadcast %27 : vector<1x32xf32> to vector<8x32xf32>
    %29 = arith.mulf %26, %28 : vector<8x32xf32>
    %c0_i32 = arith.constant 0 : i32
    %30 = arith.cmpi eq, %arg1, %c0_i32 : i32
    %31 = arith.extui %30 : i1 to i32
    %c0_i32_9 = arith.constant 0 : i32
    %32 = arith.cmpi ne, %31, %c0_i32_9 : i32
    scf.if %32 {
      %cst_15 = arith.constant 0.000000e+00 : f32
      %39 = vector.broadcast %cst_15 : f32 to vector<8x32xf32>
      %c0_16 = arith.constant 0 : index
      %c0_17 = arith.constant 0 : index
      %40 = vector.load %arg16[%c0_16, %c0_17] : memref<8x32xf32, #tpu.memory_space<vmem>>, vector<8x32xf32>
      tpu.vector_store %arg16[%c0_16, %c0_17], %39 {strides = array<i32>} : memref<8x32xf32, #tpu.memory_space<vmem>>, vector<8x32xf32>,
    } else {
    }
    %c0_10 = arith.constant 0 : index
    %c0_11 = arith.constant 0 : index
    %33 = vector.load %arg16[%c0_10, %c0_11] : memref<8x32xf32, #tpu.memory_space<vmem>>, vector<8x32xf32>
    %34 = arith.addf %33, %29 : vector<8x32xf32>
    %c0_12 = arith.constant 0 : index
    %c0_13 = arith.constant 0 : index
    %35 = vector.load %arg16[%c0_12, %c0_13] : memref<8x32xf32, #tpu.memory_space<vmem>>, vector<8x32xf32>
    tpu.vector_store %arg16[%c0_12, %c0_13], %34 {strides = array<i32>} : memref<8x32xf32, #tpu.memory_space<vmem>>, vector<8x32xf32>,
    %c2_i32 = arith.constant 2 : i32
    %36 = arith.cmpi eq, %arg1, %c2_i32 : i32
    %37 = arith.extui %36 : i1 to i32
    %c0_i32_14 = arith.constant 0 : i32
    %38 = arith.cmpi ne, %37, %c0_i32_14 : i32
    scf.if %38 {
      %c0_15 = arith.constant 0 : index
      %c0_16 = arith.constant 0 : index
      %39 = vector.load %arg16[%c0_15, %c0_16] : memref<8x32xf32, #tpu.memory_space<vmem>>, vector<8x32xf32>
      %c0_17 = arith.constant 0 : index
      %c0_18 = arith.constant 0 : index
      %40 = vector.load %arg8[%c0_17, %c0_18] : memref<1x32xf32, #tpu.memory_space<vmem>>, vector<1x32xf32>
      %41 = vector.shape_cast %40 : vector<1x32xf32> to vector<32xf32>
      %42 = vector.shape_cast %41 : vector<32xf32> to vector<1x32xf32>
      %43 = vector.broadcast %42 : vector<1x32xf32> to vector<8x32xf32>
      %44 = arith.addf %39, %43 : vector<8x32xf32>
      %c0_19 = arith.constant 0 : index
      %c0_20 = arith.constant 0 : index
      %c0_21 = arith.constant 0 : index
      %45 = vector.load %arg5[%c0_19, %c0_20, %c0_21] : memref<1x8x1xf32, #tpu.memory_space<vmem>>, vector<1x8x1xf32>
      %46 = vector.shape_cast %45 : vector<1x8x1xf32> to vector<8x1xf32>
      %cst_22 = arith.constant 0.000000e+00 : f32
      %47 = vector.broadcast %cst_22 : f32 to vector<8x1xf32>
      %48 = arith.cmpf oeq, %46, %47 : vector<8x1xf32>
      %cst_23 = arith.constant 0.000000e+00 : f32
      %49 = vector.shape_cast %48 : vector<8x1xi1> to vector<8x1xi1>
      %50 = vector.broadcast %49 : vector<8x1xi1> to vector<8x32xi1>
      %51 = vector.broadcast %cst_23 : f32 to vector<8x32xf32>
      %52 = arith.select %50, %51, %44 : vector<8x32xi1>, vector<8x32xf32>
      %c0_24 = arith.constant 0 : index
      %c0_25 = arith.constant 0 : index
      %53 = vector.load %arg9[%c0_24, %c0_25] : memref<1x32xf32, #tpu.memory_space<vmem>>, vector<1x32xf32>
      %54 = vector.broadcast %53 : vector<1x32xf32> to vector<8x32xf32>
      %55 = arith.mulf %52, %54 : vector<8x32xf32>
      %cst_26 = arith.constant dense<0.000000e+00> : vector<8xf32>
      %56 = vector.multi_reduction <add>, %55, %cst_26 [1] : vector<8x32xf32> to vector<8xf32>
      %57 = vector.shape_cast %56 : vector<8xf32> to vector<8x1xf32>
      %c0_27 = arith.constant 0 : index
      %58 = memref.load %arg3[%c0_27] : memref<1xf32, #tpu.memory_space<smem>>
      %59 = vector.broadcast %58 : f32 to vector<8x1xf32>
      %60 = arith.addf %57, %59 : vector<8x1xf32>
      %cst_28 = arith.constant 0.176776692 : f32
      %61 = vector.broadcast %cst_28 : f32 to vector<8x1xf32>
      %62 = arith.mulf %60, %61 : vector<8x1xf32>
      %cst_29 = arith.constant dense<0xFF800000> : vector<1xf32>
      %63 = vector.multi_reduction <maximumf>, %62, %cst_29 [0] : vector<8x1xf32> to vector<1xf32>
      %64 = vector.shape_cast %63 : vector<1xf32> to vector<1x1xf32>
      %65 = vector.broadcast %64 : vector<1x1xf32> to vector<8x1xf32>
      %66 = arith.subf %62, %65 : vector<8x1xf32>
      %67 = math.exp %66 : vector<8x1xf32>
      %c0_30 = arith.constant 0 : index
      %c0_31 = arith.constant 0 : index
      %c0_32 = arith.constant 0 : index
      %68 = vector.load %arg6[%c0_30, %c0_31, %c0_32] : memref<1x4x8xbf16, #tpu.memory_space<vmem>>, vector<1x4x8xbf16>
      %69 = vector.shape_cast %68 : vector<1x4x8xbf16> to vector<4x8xbf16>
      %70 = vector.broadcast %67 : vector<8x1xf32> to vector<8x32xf32>
      %71 = arith.mulf %70, %52 : vector<8x32xf32>
      %72 = arith.truncf %71 : vector<8x32xf32> to vector<8x32xbf16>
      %cst_33 = arith.constant dense<0.000000e+00> : vector<4x32xf32>
      %73 = tpu.matmul %69, %72, %cst_33 {dimension_numbers = #tpu.dot_dimension_numbers<[1], [0], [0], [1], [0, 0, 1, 1], [], []>} : vector<4x8xbf16>, vector<8x32xbf16>, vector<4x32xf32> -> vector<4x32xf32>
      %74 = arith.extf %69 : vector<4x8xbf16> to vector<4x8xf32>
      %cst_34 = arith.constant dense<0.000000e+00> : vector<4x1xf32>
      %75 = tpu.matmul %74, %67, %cst_34 {dimension_numbers = #tpu.dot_dimension_numbers<[1], [0], [0], [1], [0, 0, 1, 1], [], []>} : vector<4x8xf32>, vector<8x1xf32>, vector<4x1xf32> -> vector<4x1xf32>
      %cst_35 = arith.constant 0.000000e+00 : f32
      %76 = vector.broadcast %cst_35 : f32 to vector<4x1xf32>
      %77 = arith.cmpf oeq, %75, %76 : vector<4x1xf32>
      %cst_36 = arith.constant 1.000000e+00 : f32
      %78 = vector.broadcast %cst_36 : f32 to vector<4x1xf32>
      %79 = arith.select %77, %78, %75 : vector<4x1xi1>, vector<4x1xf32>
      %80 = tpu.reciprocal %79 {approx = true} : vector<4x1xf32> -> vector<4x1xf32>
      %81 = vector.broadcast %80 : vector<4x1xf32> to vector<4x32xf32>
      %82 = arith.mulf %73, %81 : vector<4x32xf32>
      %c0_37 = arith.constant 0 : index
      %c0_38 = arith.constant 0 : index
      %83 = vector.load %arg10[%c0_37, %c0_38] : memref<1x32xf32, #tpu.memory_space<vmem>>, vector<1x32xf32>
      %84 = vector.shape_cast %83 : vector<1x32xf32> to vector<32xf32>
      %c0_39 = arith.constant 0 : index
      %c0_40 = arith.constant 0 : index
      %85 = vector.load %arg11[%c0_39, %c0_40] : memref<1x32xf32, #tpu.memory_space<vmem>>, vector<1x32xf32>
      %86 = vector.shape_cast %85 : vector<1x32xf32> to vector<32xf32>
      %cst_41 = arith.constant dense<0.000000e+00> : vector<4xf32>
      %87 = vector.multi_reduction <add>, %82, %cst_41 [1] : vector<4x32xf32> to vector<4xf32>
      %88 = vector.shape_cast %87 : vector<4xf32> to vector<4x1xf32>
      %cst_42 = arith.constant 3.200000e+01 : f32
      %89 = vector.broadcast %cst_42 : f32 to vector<4x1xf32>
      %90 = arith.divf %88, %89 : vector<4x1xf32>
      %91 = vector.broadcast %90 : vector<4x1xf32> to vector<4x32xf32>
      %92 = arith.subf %82, %91 : vector<4x32xf32>
      %93 = arith.mulf %92, %92 : vector<4x32xf32>
      %cst_43 = arith.constant dense<0.000000e+00> : vector<4xf32>
      %94 = vector.multi_reduction <add>, %93, %cst_43 [1] : vector<4x32xf32> to vector<4xf32>
      %95 = vector.shape_cast %94 : vector<4xf32> to vector<4x1xf32>
      %cst_44 = arith.constant 3.200000e+01 : f32
      %96 = vector.broadcast %cst_44 : f32 to vector<4x1xf32>
      %97 = arith.divf %95, %96 : vector<4x1xf32>
      %98 = vector.broadcast %90 : vector<4x1xf32> to vector<4x32xf32>
      %99 = arith.subf %82, %98 : vector<4x32xf32>
      %cst_45 = arith.constant 9.99999974E-6 : f32
      %100 = vector.broadcast %cst_45 : f32 to vector<4x1xf32>
      %101 = arith.addf %97, %100 : vector<4x1xf32>
      %102 = math.rsqrt %101 : vector<4x1xf32>
      %103 = vector.broadcast %102 : vector<4x1xf32> to vector<4x32xf32>
      %104 = arith.mulf %99, %103 : vector<4x32xf32>
      %105 = vector.shape_cast %84 : vector<32xf32> to vector<1x32xf32>
      %106 = vector.broadcast %105 : vector<1x32xf32> to vector<4x32xf32>
      %107 = arith.mulf %104, %106 : vector<4x32xf32>
      %108 = vector.shape_cast %86 : vector<32xf32> to vector<1x32xf32>
      %109 = vector.broadcast %108 : vector<1x32xf32> to vector<4x32xf32>
      %110 = arith.addf %107, %109 : vector<4x32xf32>
      %c0_46 = arith.constant 0 : index
      %c0_47 = arith.constant 0 : index
      %c0_48 = arith.constant 0 : index
      %111 = vector.load %arg14[%c0_46, %c0_47, %c0_48] : memref<1x4x32xf32, #tpu.memory_space<vmem>>, vector<1x4x32xf32>
      %112 = vector.shape_cast %111 : vector<1x4x32xf32> to vector<4x32xf32>
      %113 = vector.shape_cast %110 : vector<4x32xf32> to vector<1x4x32xf32>
      tpu.vector_store %arg14[%c0_46, %c0_47, %c0_48], %113 {strides = array<i32>} : memref<1x4x32xf32, #tpu.memory_space<vmem>>, vector<1x4x32xf32>,
      %114 = arith.truncf %110 : vector<4x32xf32> to vector<4x32xbf16>
      %c0_49 = arith.constant 0 : index
      %c0_50 = arith.constant 0 : index
      %115 = vector.load %arg12[%c0_49, %c0_50] : memref<32x64xbf16, #tpu.memory_space<vmem>>, vector<32x64xbf16>
      %cst_51 = arith.constant dense<0.000000e+00> : vector<4x64xf32>
      %116 = tpu.matmul %114, %115, %cst_51 {dimension_numbers = #tpu.dot_dimension_numbers<[1], [0], [0], [1], [0, 0, 1, 1], [], []>} : vector<4x32xbf16>, vector<32x64xbf16>, vector<4x64xf32> -> vector<4x64xf32>
      %c0_52 = arith.constant 0 : index
      %c0_53 = arith.constant 0 : index
      %117 = vector.load %arg13[%c0_52, %c0_53] : memref<1x64xf32, #tpu.memory_space<vmem>>, vector<1x64xf32>
      %118 = vector.shape_cast %117 : vector<1x64xf32> to vector<64xf32>
      %119 = vector.shape_cast %118 : vector<64xf32> to vector<1x64xf32>
      %120 = vector.broadcast %119 : vector<1x64xf32> to vector<4x64xf32>
      %121 = arith.addf %116, %120 : vector<4x64xf32>
      %c0_54 = arith.constant 0 : index
      %c0_55 = arith.constant 0 : index
      %c0_56 = arith.constant 0 : index
      %122 = vector.load %arg15[%c0_54, %c0_55, %c0_56] : memref<1x4x64xf32, #tpu.memory_space<vmem>>, vector<1x4x64xf32>
      %123 = vector.shape_cast %122 : vector<1x4x64xf32> to vector<4x64xf32>
      %124 = vector.shape_cast %121 : vector<4x64xf32> to vector<1x4x64xf32>
      tpu.vector_store %arg15[%c0_54, %c0_55, %c0_56], %124 {strides = array<i32>} : memref<1x4x64xf32, #tpu.memory_space<vmem>>, vector<1x4x64xf32>,
    } else {
    }
    return
  }
  func.func @transform_0(%arg0: i32, %arg1: i32, %arg2: memref<3xf32, #tpu.memory_space<smem>>, %arg3: memref<1xf32, #tpu.memory_space<smem>>) -> (i32, i32, i32, i32) {
    %c0_i32 = arith.constant 0 : i32
    %c0_i32_0 = arith.constant 0 : i32
    %c0_i32_1 = arith.constant 0 : i32
    return %arg1, %arg0, %c0_i32, %c0_i32_0 : i32, i32, i32, i32
  }
  func.func @transform_1(%arg0: i32, %arg1: i32, %arg2: memref<3xf32, #tpu.memory_space<smem>>, %arg3: memref<1xf32, #tpu.memory_space<smem>>) -> (i32, i32, i32) {
    %c0_i32 = arith.constant 0 : i32
    %c0_i32_0 = arith.constant 0 : i32
    %c0_i32_1 = arith.constant 0 : i32
    return %arg0, %c0_i32, %c0_i32_0 : i32, i32, i32
  }
  func.func @transform_2(%arg0: i32, %arg1: i32, %arg2: memref<3xf32, #tpu.memory_space<smem>>, %arg3: memref<1xf32, #tpu.memory_space<smem>>) -> (i32, i32, i32) {
    %c0_i32 = arith.constant 0 : i32
    %c0_i32_0 = arith.constant 0 : i32
    %c0_i32_1 = arith.constant 0 : i32
    return %arg0, %c0_i32, %c0_i32_0 : i32, i32, i32
  }
  func.func @transform_3(%arg0: i32, %arg1: i32, %arg2: memref<3xf32, #tpu.memory_space<smem>>, %arg3: memref<1xf32, #tpu.memory_space<smem>>) -> (i32, i32) {
    %c0_i32 = arith.constant 0 : i32
    %c0_i32_0 = arith.constant 0 : i32
    %c0_i32_1 = arith.constant 0 : i32
    return %c0_i32, %c0_i32_0 : i32, i32
  }
  func.func @transform_4(%arg0: i32, %arg1: i32, %arg2: memref<3xf32, #tpu.memory_space<smem>>, %arg3: memref<1xf32, #tpu.memory_space<smem>>) -> (i32, i32) {
    %c0_i32 = arith.constant 0 : i32
    %c0_i32_0 = arith.constant 0 : i32
    %c0_i32_1 = arith.constant 0 : i32
    return %c0_i32, %c0_i32_0 : i32, i32
  }
  func.func @transform_5(%arg0: i32, %arg1: i32, %arg2: memref<3xf32, #tpu.memory_space<smem>>, %arg3: memref<1xf32, #tpu.memory_space<smem>>) -> (i32, i32) {
    %c0_i32 = arith.constant 0 : i32
    %c0_i32_0 = arith.constant 0 : i32
    %c0_i32_1 = arith.constant 0 : i32
    return %c0_i32, %c0_i32_0 : i32, i32
  }
  func.func @transform_6(%arg0: i32, %arg1: i32, %arg2: memref<3xf32, #tpu.memory_space<smem>>, %arg3: memref<1xf32, #tpu.memory_space<smem>>) -> (i32, i32) {
    %c0_i32 = arith.constant 0 : i32
    %c0_i32_0 = arith.constant 0 : i32
    %c0_i32_1 = arith.constant 0 : i32
    return %c0_i32, %c0_i32_0 : i32, i32
  }
  func.func @transform_7(%arg0: i32, %arg1: i32, %arg2: memref<3xf32, #tpu.memory_space<smem>>, %arg3: memref<1xf32, #tpu.memory_space<smem>>) -> (i32, i32) {
    %c0_i32 = arith.constant 0 : i32
    %c0_i32_0 = arith.constant 0 : i32
    %c0_i32_1 = arith.constant 0 : i32
    return %c0_i32, %c0_i32_0 : i32, i32
  }
  func.func @transform_8(%arg0: i32, %arg1: i32, %arg2: memref<3xf32, #tpu.memory_space<smem>>, %arg3: memref<1xf32, #tpu.memory_space<smem>>) -> (i32, i32) {
    %c0_i32 = arith.constant 0 : i32
    %c0_i32_0 = arith.constant 0 : i32
    %c0_i32_1 = arith.constant 0 : i32
    return %c0_i32, %c0_i32_0 : i32, i32
  }
  func.func @transform_9(%arg0: i32, %arg1: i32, %arg2: memref<3xf32, #tpu.memory_space<smem>>, %arg3: memref<1xf32, #tpu.memory_space<smem>>) -> (i32, i32) {
    %c0_i32 = arith.constant 0 : i32
    %c0_i32_0 = arith.constant 0 : i32
    %c0_i32_1 = arith.constant 0 : i32
    return %c0_i32, %c0_i32_0 : i32, i32
  }
  func.func @transform_10(%arg0: i32, %arg1: i32, %arg2: memref<3xf32, #tpu.memory_space<smem>>, %arg3: memref<1xf32, #tpu.memory_space<smem>>) -> (i32, i32, i32) {
    %c0_i32 = arith.constant 0 : i32
    %c0_i32_0 = arith.constant 0 : i32
    %c0_i32_1 = arith.constant 0 : i32
    return %arg0, %c0_i32, %c0_i32_0 : i32, i32, i32
  }
  func.func @transform_11(%arg0: i32, %arg1: i32, %arg2: memref<3xf32, #tpu.memory_space<smem>>, %arg3: memref<1xf32, #tpu.memory_space<smem>>) -> (i32, i32, i32) {
    %c0_i32 = arith.constant 0 : i32
    %c0_i32_0 = arith.constant 0 : i32
    %c0_i32_1 = arith.constant 0 : i32
    return %arg0, %c0_i32, %c0_i32_0 : i32, i32, i32
  }
}

</mosaic_0001>

<llo_original>
// kernel: tpu_custom_call.1
$region0: #{tpu_custom_call.1}
  #allocation0 [shape = 'u32[]', space=smem, size = 0x4, offset = 0x4, fixed_abs, tag = 'smem constant byte address 0x4 - core index']
  #allocation1 [shape = 'u32[144,128]{1,0:T(1,128)}', space=vmem, size = 0x12000, scoped, tag = 'internal scratch']
  #allocation2 [shape = 'f32[8,32]{1,0:T(8,128)}', space=vmem, size = 0x1000, scoped, tag = 'scratch operand']
  #allocation3 [shape = 's32[1]{0}', space=sflag, size = 0x4, scoped, tag = 'scoped memory for tpu_custom_call.1']
  #allocation4 [shape = 'u8[512]{0}', space=smem, size = 0x200, scoped, tag = 'prefetched SMEM operand 0']
  #allocation5 [shape = 'f32[1]{0:T(128)S(6)}', space=smem, size = 0x200, scoped, tag = 'prefetched SMEM operand 1']
  %s0 = inlined_call_operand.hbm [shape: f32[3], index: 0, kind: input, shape index: {}]
  %s1 = inlined_call_operand.<no memory space> [shape: f32[1], index: 1, kind: input, shape index: {}]
  %s2 = inlined_call_operand.vmem [shape: bf16[3,2,8,32], index: 2, kind: input, shape index: {}]
  %s3 = inlined_call_operand.vmem [shape: f32[2,8,1], index: 3, kind: input, shape index: {}]
  %s4 = inlined_call_operand.hbm [shape: bf16[2,4,8], index: 4, kind: input, shape index: {}]
  %s5 = inlined_call_operand.hbm [shape: f32[1,32], index: 5, kind: input, shape index: {}]
  %s6 = inlined_call_operand.hbm [shape: f32[1,32], index: 6, kind: input, shape index: {}]
  %s7 = inlined_call_operand.vmem [shape: f32[1,32], index: 7, kind: input, shape index: {}]
  %s8 = inlined_call_operand.vmem [shape: f32[1,32], index: 8, kind: input, shape index: {}]
  %s9 = inlined_call_operand.vmem [shape: f32[1,32], index: 9, kind: input, shape index: {}]
  %s10 = inlined_call_operand.vmem [shape: bf16[32,64], index: 10, kind: input, shape index: {}]
  %s11 = inlined_call_operand.vmem [shape: f32[1,64], index: 11, kind: input, shape index: {}]
  %s12 = inlined_call_operand.hbm [shape: f32[2,4,32], index: 12, kind: output, shape index: {0}]
  %s13 = inlined_call_operand.hbm [shape: f32[2,4,64], index: 13, kind: output, shape index: {1}]
  %14 = xla_tuple %s12, %s13
  %s15 = sld [smem:[#allocation0]]
  $region101: #{tpu_custom_call.1} parent=0
    _
  %s17 = ssub.s32 1, %s15
  %s18 = scalar_select 0, %s17, %s15
  %20 = dma.hbm_to_smem %s0, 16, [#allocation4], [#allocation3]
  %21 = sst [smem:[#allocation5]] %s1
  %22 = dma.done [#allocation3], 16
  %23 = sfence
  $region1: #{tpu_custom_call.1} parent=0
    #allocation6 [shape = 'u8[2048]{0}', space=vmem, size = 0x800, scoped, tag = 'input window, operand 4']
    #allocation7 [shape = 's32[2]{0}', space=sflag, size = 0x8, scoped, tag = 'scoped memory for tpu_custom_call.1']
    #allocation8 [shape = 's32[2]{0}', space=sflag, size = 0x8, scoped, tag = 'scoped memory for tpu_custom_call.1']
    #allocation9 [shape = 'u8[512]{0}', space=vmem, size = 0x400, scoped, tag = 'input window, operand 5, single buffered']
    #allocation10 [shape = 's32[1]{0}', space=sflag, size = 0x4, scoped, tag = 'scoped memory for tpu_custom_call.1']
    #allocation11 [shape = 'u8[512]{0}', space=vmem, size = 0x400, scoped, tag = 'input window, operand 6, single buffered']
    #allocation12 [shape = 'u8[4096]{0}', space=vmem, size = 0x1000, scoped, tag = 'output window, operand 0']
    #allocation13 [shape = 'u8[4096]{0}', space=vmem, size = 0x1000, scoped, tag = 'output window, operand 1']
    #allocation14 [shape = 's32[2]{0}', space=sflag, size = 0x8, scoped, tag = 'scoped memory for tpu_custom_call.1']
    %24 = vsyncpa [#allocation7], 0
    %s25 = scalar_lea.sflag [#allocation7], 1
    %26 = vsyncpa %s25, 0
    %27 = vsyncpa [#allocation10], 0
    %28 = vsyncpa [#allocation8], 0
    %s29 = scalar_lea.sflag [#allocation8], 1
    %30 = vsyncpa %s29, 0
    %31 = vsyncpa [#allocation14], 0
    %s32 = scalar_lea.sflag [#allocation14], 1
    %33 = vsyncpa %s32, 0
    loop: start=0, step=1, limit=8
    $region2: #{tpu_custom_call.1} parent=1 // loop_pre_header
      _
    $region3: #{tpu_custom_call.1} parent=1 // loop_header
      %s35 = sphi 0, %s39
      %p36 = scmp.ge.s32.totalorder %s35, 8
      %s42 = sphi 0, %s54
      %s43 = sphi 0, %s50
      %s44 = sphi 0, %s42
      %s45 = sphi 0, %s43
      %s46 = sphi 0, %s44
      %s47 = sphi 0, %s45
      %s59 = sphi 0, %s61
      %s62 = sphi 0, %s59
      %s63 = sphi 0, %s62
      %s79 = sphi 0, %s63
      %s85 = sphi 0, %s87
      %s88 = sphi 0, %s85
      %s89 = sphi 0, %s88
      %s105 = sphi 0, %s89
      %s111 = sphi 0, %s113
      %s114 = sphi 0, %s111
      %s115 = sphi 0, %s114
      %s131 = sphi 0, %s115
      %s135 = sphi 0, %s135
      %s137 = sphi 0, %s135
      %s138 = sphi 0, %s137
      %s152 = sphi 0, %s138
      %s156 = sphi 0, %s156
      %s158 = sphi 0, %s156
      %s159 = sphi 0, %s158
      %s173 = sphi 0, %s159
      %s177 = sphi 0, %s177
      %s179 = sphi 0, %s177
      %s180 = sphi 0, %s179
      %s194 = sphi 0, %s180
      %s198 = sphi 0, %s198
      %s200 = sphi 0, %s198
      %s201 = sphi 0, %s200
      %s215 = sphi 0, %s201
      %s219 = sphi 0, %s219
      %s221 = sphi 0, %s219
      %s222 = sphi 0, %s221
      %s236 = sphi 0, %s222
      %s240 = sphi 0, %s240
      %s242 = sphi 0, %s240
      %s243 = sphi 0, %s242
      %s257 = sphi 0, %s243
      %s261 = sphi 0, %s261
      %s263 = sphi 0, %s261
      %s264 = sphi 0, %s263
      %s278 = sphi 0, %s264
      %s284 = sphi 0, %s286
      %s287 = sphi 0, %s284
      %s288 = sphi 0, %s287
      %s304 = sphi 0, %s288
      %s310 = sphi 0, %s312
      %s313 = sphi 0, %s310
      %s314 = sphi 0, %s313
      %s330 = sphi 0, %s314
    $region4: #{tpu_custom_call.1} parent=1 // loop_header_branch
      %38 = sbr.rel (%p36) target = $region8
    $region5: #{tpu_custom_call.1} parent=1 // loop_body
      %s40 = ssub.s32 %s35, 1
      %s41 = ssub.s32 %s35, 2
      %s48 = sadd.s32 1, %s43
      %p49 = scmp.ge.s32.totalorder %s48, 3
      %s50 = scalar_select %p49, 0, %s48
      %s51 = sadd.s32 1, %s42
      %s52 = scalar_select %p49, %s51, %s42
      %p53 = scmp.ge.s32.totalorder %s52, 2
      %s54 = scalar_select %p53, 0, %s52
      %s55 = ssub.s32 %s43, %s50
      %s56 = ssub.s32 %s42, %s54
      %s57 = sor.u32 %s55, %s56
      %p58 = scmp.eq.s32.totalorder %s57, 0
      %s60 = sadd.s32 %s59, 1
      %s61 = scalar_select %p58, %s59, %s60
      %p64 = pneg %p58
      %p65 = scmp.eq.s32.totalorder %s35, 5
      %p66 = por %p64, %p65
      %p67 = scmp.ne.s32.totalorder %s59, %s62
      %p68 = scmp.eq.s32.totalorder %s35, 0
      %p69 = por %p67, %p68
      %p70 = scmp.ne.s32.totalorder %s59, %s62
      %p71 = scmp.eq.s32.totalorder %s40, 5
      %p72 = por %p70, %p71
      %p73 = scmp.ne.s32.totalorder %s62, %s63
      %p74 = scmp.eq.s32.totalorder %s40, 0
      %p75 = por %p73, %p74
      %p76 = scmp.ne.s32.totalorder %s62, %s63
      %p77 = scmp.eq.s32.totalorder %s41, 5
      %p78 = por %p76, %p77
      %p80 = scmp.ne.s32.totalorder %s63, %s79
      %p81 = scmp.eq.s32.totalorder %s41, 0
      %p82 = por %p80, %p81
      %s83 = ssub.s32 %s42, %s54
      %p84 = scmp.eq.s32.totalorder %s83, 0
      %s86 = sadd.s32 %s85, 1
      %s87 = scalar_select %p84, %s85, %s86
      %p90 = pneg %p84
      %p91 = scmp.eq.s32.totalorder %s35, 5
      %p92 = por %p90, %p91
      %p93 = scmp.ne.s32.totalorder %s85, %s88
      %p94 = scmp.eq.s32.totalorder %s35, 0
      %p95 = por %p93, %p94
      %p96 = scmp.ne.s32.totalorder %s85, %s88
      %p97 = scmp.eq.s32.totalorder %s40, 5
      %p98 = por %p96, %p97
      %p99 = scmp.ne.s32.totalorder %s88, %s89
      %p100 = scmp.eq.s32.totalorder %s40, 0
      %p101 = por %p99, %p100
      %p102 = scmp.ne.s32.totalorder %s88, %s89
      %p103 = scmp.eq.s32.totalorder %s41, 5
      %p104 = por %p102, %p103
      %p106 = scmp.ne.s32.totalorder %s89, %s105
      %p107 = scmp.eq.s32.totalorder %s41, 0
      %p108 = por %p106, %p107
      %s109 = ssub.s32 %s42, %s54
      %p110 = scmp.eq.s32.totalorder %s109, 0
      %s112 = sadd.s32 %s111, 1
      %s113 = scalar_select %p110, %s111, %s112
      %p116 = pneg %p110
      %p117 = scmp.eq.s32.totalorder %s35, 5
      %p118 = por %p116, %p117
      %p119 = scmp.ne.s32.totalorder %s111, %s114
      %p120 = scmp.eq.s32.totalorder %s35, 0
      %p121 = por %p119, %p120
      %p122 = scmp.ne.s32.totalorder %s111, %s114
      %p123 = scmp.eq.s32.totalorder %s40, 5
      %p124 = por %p122, %p123
      %p125 = scmp.ne.s32.totalorder %s114, %s115
      %p126 = scmp.eq.s32.totalorder %s40, 0
      %p127 = por %p125, %p126
      %p128 = scmp.ne.s32.totalorder %s114, %s115
      %p129 = scmp.eq.s32.totalorder %s41, 5
      %p130 = por %p128, %p129
      %p132 = scmp.ne.s32.totalorder %s115, %s131
      %p133 = scmp.eq.s32.totalorder %s41, 0
      %p134 = por %p132, %p133
      %s136 = sadd.s32 %s135, 1
      %p139 = scmp.eq.s32.totalorder %s35, 5
      %p140 = scmp.ne.s32.totalorder %s135, %s137
      %p141 = scmp.eq.s32.totalorder %s35, 0
      %p142 = por %p140, %p141
      %p143 = scmp.ne.s32.totalorder %s135, %s137
      %p144 = scmp.eq.s32.totalorder %s40, 5
      %p145 = por %p143, %p144
      %p146 = scmp.ne.s32.totalorder %s137, %s138
      %p147 = scmp.eq.s32.totalorder %s40, 0
      %p148 = por %p146, %p147
      %p149 = scmp.ne.s32.totalorder %s137, %s138
      %p150 = scmp.eq.s32.totalorder %s41, 5
      %p151 = por %p149, %p150
      %p153 = scmp.ne.s32.totalorder %s138, %s152
      %p154 = scmp.eq.s32.totalorder %s41, 0
      %p155 = por %p153, %p154
      %s157 = sadd.s32 %s156, 1
      %p160 = scmp.eq.s32.totalorder %s35, 5
      %p161 = scmp.ne.s32.totalorder %s156, %s158
      %p162 = scmp.eq.s32.totalorder %s35, 0
      %p163 = por %p161, %p162
      %p164 = scmp.ne.s32.totalorder %s156, %s158
      %p165 = scmp.eq.s32.totalorder %s40, 5
      %p166 = por %p164, %p165
      %p167 = scmp.ne.s32.totalorder %s158, %s159
      %p168 = scmp.eq.s32.totalorder %s40, 0
      %p169 = por %p167, %p168
      %p170 = scmp.ne.s32.totalorder %s158, %s159
      %p171 = scmp.eq.s32.totalorder %s41, 5
      %p172 = por %p170, %p171
      %p174 = scmp.ne.s32.totalorder %s159, %s173
      %p175 = scmp.eq.s32.totalorder %s41, 0
      %p176 = por %p174, %p175
      %s178 = sadd.s32 %s177, 1
      %p181 = scmp.eq.s32.totalorder %s35, 5
      %p182 = scmp.ne.s32.totalorder %s177, %s179
      %p183 = scmp.eq.s32.totalorder %s35, 0
      %p184 = por %p182, %p183
      %p185 = scmp.ne.s32.totalorder %s177, %s179
      %p186 = scmp.eq.s32.totalorder %s40, 5
      %p187 = por %p185, %p186
      %p188 = scmp.ne.s32.totalorder %s179, %s180
      %p189 = scmp.eq.s32.totalorder %s40, 0
      %p190 = por %p188, %p189
      %p191 = scmp.ne.s32.totalorder %s179, %s180
      %p192 = scmp.eq.s32.totalorder %s41, 5
      %p193 = por %p191, %p192
      %p195 = scmp.ne.s32.totalorder %s180, %s194
      %p196 = scmp.eq.s32.totalorder %s41, 0
      %p197 = por %p195, %p196
      %s199 = sadd.s32 %s198, 1
      %p202 = scmp.eq.s32.totalorder %s35, 5
      %p203 = scmp.ne.s32.totalorder %s198, %s200
      %p204 = scmp.eq.s32.totalorder %s35, 0
      %p205 = por %p203, %p204
      %p206 = scmp.ne.s32.totalorder %s198, %s200
      %p207 = scmp.eq.s32.totalorder %s40, 5
      %p208 = por %p206, %p207
      %p209 = scmp.ne.s32.totalorder %s200, %s201
      %p210 = scmp.eq.s32.totalorder %s40, 0
      %p211 = por %p209, %p210
      %p212 = scmp.ne.s32.totalorder %s200, %s201
      %p213 = scmp.eq.s32.totalorder %s41, 5
      %p214 = por %p212, %p213
      %p216 = scmp.ne.s32.totalorder %s201, %s215
      %p217 = scmp.eq.s32.totalorder %s41, 0
      %p218 = por %p216, %p217
      %s220 = sadd.s32 %s219, 1
      %p223 = scmp.eq.s32.totalorder %s35, 5
      %p224 = scmp.ne.s32.totalorder %s219, %s221
      %p225 = scmp.eq.s32.totalorder %s35, 0
      %p226 = por %p224, %p225
      %p227 = scmp.ne.s32.totalorder %s219, %s221
      %p228 = scmp.eq.s32.totalorder %s40, 5
      %p229 = por %p227, %p228
      %p230 = scmp.ne.s32.totalorder %s221, %s222
      %p231 = scmp.eq.s32.totalorder %s40, 0
      %p232 = por %p230, %p231
      %p233 = scmp.ne.s32.totalorder %s221, %s222
      %p234 = scmp.eq.s32.totalorder %s41, 5
      %p235 = por %p233, %p234
      %p237 = scmp.ne.s32.totalorder %s222, %s236
      %p238 = scmp.eq.s32.totalorder %s41, 0
      %p239 = por %p237, %p238
      %s241 = sadd.s32 %s240, 1
      %p244 = scmp.eq.s32.totalorder %s35, 5
      %p245 = scmp.ne.s32.totalorder %s240, %s242
      %p246 = scmp.eq.s32.totalorder %s35, 0
      %p247 = por %p245, %p246
      %p248 = scmp.ne.s32.totalorder %s240, %s242
      %p249 = scmp.eq.s32.totalorder %s40, 5
      %p250 = por %p248, %p249
      %p251 = scmp.ne.s32.totalorder %s242, %s243
      %p252 = scmp.eq.s32.totalorder %s40, 0
      %p253 = por %p251, %p252
      %p254 = scmp.ne.s32.totalorder %s242, %s243
      %p255 = scmp.eq.s32.totalorder %s41, 5
      %p256 = por %p254, %p255
      %p258 = scmp.ne.s32.totalorder %s243, %s257
      %p259 = scmp.eq.s32.totalorder %s41, 0
      %p260 = por %p258, %p259
      %s262 = sadd.s32 %s261, 1
      %p265 = scmp.eq.s32.totalorder %s35, 5
      %p266 = scmp.ne.s32.totalorder %s261, %s263
      %p267 = scmp.eq.s32.totalorder %s35, 0
      %p268 = por %p266, %p267
      %p269 = scmp.ne.s32.totalorder %s261, %s263
      %p270 = scmp.eq.s32.totalorder %s40, 5
      %p271 = por %p269, %p270
      %p272 = scmp.ne.s32.totalorder %s263, %s264
      %p273 = scmp.eq.s32.totalorder %s40, 0
      %p274 = por %p272, %p273
      %p275 = scmp.ne.s32.totalorder %s263, %s264
      %p276 = scmp.eq.s32.totalorder %s41, 5
      %p277 = por %p275, %p276
      %p279 = scmp.ne.s32.totalorder %s264, %s278
      %p280 = scmp.eq.s32.totalorder %s41, 0
      %p281 = por %p279, %p280
      %s282 = ssub.s32 %s42, %s54
      %p283 = scmp.eq.s32.totalorder %s282, 0
      %s285 = sadd.s32 %s284, 1
      %s286 = scalar_select %p283, %s284, %s285
      %p289 = pneg %p283
      %p290 = scmp.eq.s32.totalorder %s35, 5
      %p291 = por %p289, %p290
      %p292 = scmp.ne.s32.totalorder %s284, %s287
      %p293 = scmp.eq.s32.totalorder %s35, 0
      %p294 = por %p292, %p293
      %p295 = scmp.ne.s32.totalorder %s284, %s287
      %p296 = scmp.eq.s32.totalorder %s40, 5
      %p297 = por %p295, %p296
      %p298 = scmp.ne.s32.totalorder %s287, %s288
      %p299 = scmp.eq.s32.totalorder %s40, 0
      %p300 = por %p298, %p299
      %p301 = scmp.ne.s32.totalorder %s287, %s288
      %p302 = scmp.eq.s32.totalorder %s41, 5
      %p303 = por %p301, %p302
      %p305 = scmp.ne.s32.totalorder %s288, %s304
      %p306 = scmp.eq.s32.totalorder %s41, 0
      %p307 = por %p305, %p306
      %s308 = ssub.s32 %s42, %s54
      %p309 = scmp.eq.s32.totalorder %s308, 0
      %s311 = sadd.s32 %s310, 1
      %s312 = scalar_select %p309, %s310, %s311
      %p315 = pneg %p309
      %p316 = scmp.eq.s32.totalorder %s35, 5
      %p317 = por %p315, %p316
      %p318 = scmp.ne.s32.totalorder %s310, %s313
      %p319 = scmp.eq.s32.totalorder %s35, 0
      %p320 = por %p318, %p319
      %p321 = scmp.ne.s32.totalorder %s310, %s313
      %p322 = scmp.eq.s32.totalorder %s40, 5
      %p323 = por %p321, %p322
      %p324 = scmp.ne.s32.totalorder %s313, %s314
      %p325 = scmp.eq.s32.totalorder %s40, 0
      %p326 = por %p324, %p325
      %p327 = scmp.ne.s32.totalorder %s313, %s314
      %p328 = scmp.eq.s32.totalorder %s41, 5
      %p329 = por %p327, %p328
      %p331 = scmp.ne.s32.totalorder %s314, %s330
      %p332 = scmp.eq.s32.totalorder %s41, 0
      %p333 = por %p331, %p332
      %p334 = scmp.le.s32.totalorder 1, %s35
      %p335 = scmp.lt.s32.totalorder %s35, 7
      %p336 = pnand %p334, %p335
      %p337 = pneg %p336
      // Predicated region
      $region9: #{tpu_custom_call.1} parent=5 // pred_check
        _
      $region10: #{tpu_custom_call.1} parent=5 // pred_check_branch
        %339 = sbr.rel (%p336) target = $region12
      $region11: #{tpu_custom_call.1} parent=5 // pred_region
        %s340 = ssub.s32 %s35, 1
        // Predicated region
        $region13: #{tpu_custom_call.1} parent=11 // pred_check
          %p341 = pneg %p148
        $region14: #{tpu_custom_call.1} parent=11 // pred_check_branch
          %343 = sbr.rel (%p341) target = $region16
        $region15: #{tpu_custom_call.1} parent=11 // pred_region
          %s345 = ssub.s32 16, 16
          %346 = vsyncadd [#allocation10], %s345
          %s348 = sshll.u32 [#allocation9], 4
          %s349 = int_to_ptr.vmem [resolvable:$true] %s348
          %351 = dma.hbm_to_vmem [thread:$0]  %s5, 16, %s349, [#allocation10]
        $region16: #{tpu_custom_call.1} parent=11 // pred_fallthru
          _
        // Predicated region
        $region17: #{tpu_custom_call.1} parent=11 // pred_check
          %p352 = pneg %p169
        $region18: #{tpu_custom_call.1} parent=11 // pred_check_branch
          %354 = sbr.rel (%p352) target = $region20
        $region19: #{tpu_custom_call.1} parent=11 // pred_region
          %s356 = ssub.s32 16, 16
          %357 = vsyncadd [#allocation10], %s356
          %s359 = sshll.u32 [#allocation11], 4
          %s360 = int_to_ptr.vmem [resolvable:$true] %s359
          %362 = dma.hbm_to_vmem [thread:$0]  %s6, 16, %s360, [#allocation10]
        $region20: #{tpu_custom_call.1} parent=11 // pred_fallthru
          _
        // Predicated region
        $region21: #{tpu_custom_call.1} parent=11 // pred_check
          %p363 = pneg %p190
        $region22: #{tpu_custom_call.1} parent=11 // pred_check_branch
          %365 = sbr.rel (%p363) target = $region24
        $region23: #{tpu_custom_call.1} parent=11 // pred_region
          _
        $region24: #{tpu_custom_call.1} parent=11 // pred_fallthru
          _
        // Predicated region
        $region25: #{tpu_custom_call.1} parent=11 // pred_check
          %p366 = pneg %p211
        $region26: #{tpu_custom_call.1} parent=11 // pred_check_branch
          %368 = sbr.rel (%p366) target = $region28
        $region27: #{tpu_custom_call.1} parent=11 // pred_region
          _
        $region28: #{tpu_custom_call.1} parent=11 // pred_fallthru
          _
        // Predicated region
        $region29: #{tpu_custom_call.1} parent=11 // pred_check
          %p369 = pneg %p232
        $region30: #{tpu_custom_call.1} parent=11 // pred_check_branch
          %371 = sbr.rel (%p369) target = $region32
        $region31: #{tpu_custom_call.1} parent=11 // pred_region
          _
        $region32: #{tpu_custom_call.1} parent=11 // pred_fallthru
          _
        // Predicated region
        $region33: #{tpu_custom_call.1} parent=11 // pred_check
          %p372 = pneg %p253
        $region34: #{tpu_custom_call.1} parent=11 // pred_check_branch
          %374 = sbr.rel (%p372) target = $region36
        $region35: #{tpu_custom_call.1} parent=11 // pred_region
          _
        $region36: #{tpu_custom_call.1} parent=11 // pred_fallthru
          _
        // Predicated region
        $region37: #{tpu_custom_call.1} parent=11 // pred_check
          %p375 = pneg %p274
        $region38: #{tpu_custom_call.1} parent=11 // pred_check_branch
          %377 = sbr.rel (%p375) target = $region40
        $region39: #{tpu_custom_call.1} parent=11 // pred_region
          _
        $region40: #{tpu_custom_call.1} parent=11 // pred_fallthru
          _
      $region12: #{tpu_custom_call.1} parent=5 // pred_fallthru
        _
      %p378 = scmp.lt.s32.totalorder %s35, 6
      // Predicated region
      $region41: #{tpu_custom_call.1} parent=5 // pred_check
        %p379 = pneg %p378
      $region42: #{tpu_custom_call.1} parent=5 // pred_check_branch
        %381 = sbr.rel (%p379) target = $region44
      $region43: #{tpu_custom_call.1} parent=5 // pred_region
        // Predicated region
        $region45: #{tpu_custom_call.1} parent=43 // pred_check
          %p382 = pneg %p69
        $region46: #{tpu_custom_call.1} parent=43 // pred_check_branch
          %384 = sbr.rel (%p382) target = $region48
        $region47: #{tpu_custom_call.1} parent=43 // pred_region
          %p385 = scmp.lt.s32.totalorder %s43, 2
          %s386 = scalar_select %p385, %s43, 2
          %p387 = scmp.lt.s32.totalorder %s42, 1
          %s388 = scalar_select %p387, %s42, 1
          %s389 = smul.addr %s386, 2
          %s390 = sadd.s32 %s388, %s389
          %s391 = smul.addr %s390, 4
          %s392 = scalar_lea.vmem %s2, %s391
        $region48: #{tpu_custom_call.1} parent=43 // pred_fallthru
          _
        // Predicated region
        $region49: #{tpu_custom_call.1} parent=43 // pred_check
          %p393 = pneg %p95
        $region50: #{tpu_custom_call.1} parent=43 // pred_check_branch
          %395 = sbr.rel (%p393) target = $region52
        $region51: #{tpu_custom_call.1} parent=43 // pred_region
          %p396 = scmp.lt.s32.totalorder %s42, 1
          %s397 = scalar_select %p396, %s42, 1
          %s398 = smul.addr %s397, 8
          %s399 = scalar_lea.vmem %s3, %s398
        $region52: #{tpu_custom_call.1} parent=43 // pred_fallthru
          _
        // Predicated region
        $region53: #{tpu_custom_call.1} parent=43 // pred_check
          %p400 = pneg %p121
        $region54: #{tpu_custom_call.1} parent=43 // pred_check_branch
          %402 = sbr.rel (%p400) target = $region56
        $region55: #{tpu_custom_call.1} parent=43 // pred_region
          %s403 = sand.u32 %s111, 1
          %s404 = scalar_lea.sflag [#allocation7], %s403
          %s405 = sand.u32 %s111, 1
          %s406 = smul.addr %s405, 2
          %s407 = scalar_lea.vmem [#allocation6], %s406
          %s409 = ssub.s32 32, 32
          %410 = vsyncadd %s404, %s409
          %s411 = smul.addr %s42, 32
          %s412 = scalar_lea.hbm %s4, %s411
          %s414 = sshll.u32 %s407, 4
          %s415 = int_to_ptr.vmem [resolvable:$true] %s414
          %417 = dma.hbm_to_vmem [thread:$0]  %s412, 32, %s415, %s404
        $region56: #{tpu_custom_call.1} parent=43 // pred_fallthru
          _
      $region44: #{tpu_custom_call.1} parent=5 // pred_fallthru
        _
      %p418 = scmp.le.s32.totalorder 1, %s35
      %p419 = scmp.lt.s32.totalorder %s35, 7
      %p420 = pnand %p418, %p419
      %p421 = pneg %p420
      // Predicated region
      $region57: #{tpu_custom_call.1} parent=5 // pred_check
        _
      $region58: #{tpu_custom_call.1} parent=5 // pred_check_branch
        %423 = sbr.rel (%p420) target = $region60
      $region59: #{tpu_custom_call.1} parent=5 // pred_region
        %s424 = ssub.s32 %s35, 1
        %s425 = sand.u32 %s114, 1
        %s426 = scalar_lea.sflag [#allocation7], %s425
        %s427 = sand.u32 %s114, 1
        %s428 = smul.addr %s427, 2
        %s429 = scalar_lea.vmem [#allocation6], %s428
        // Predicated region
        $region61: #{tpu_custom_call.1} parent=59 // pred_check
          %p430 = pneg %p127
        $region62: #{tpu_custom_call.1} parent=59 // pred_check_branch
          %432 = sbr.rel (%p430) target = $region64
        $region63: #{tpu_custom_call.1} parent=59 // pred_region
          %433 = dma.done %s426, 32
        $region64: #{tpu_custom_call.1} parent=59 // pred_fallthru
          _
        // Predicated region
        $region65: #{tpu_custom_call.1} parent=59 // pred_check
          %p434 = pneg %p148
        $region66: #{tpu_custom_call.1} parent=59 // pred_check_branch
          %436 = sbr.rel (%p434) target = $region68
        $region67: #{tpu_custom_call.1} parent=59 // pred_region
          %437 = dma.done [#allocation10], 16
        $region68: #{tpu_custom_call.1} parent=59 // pred_fallthru
          _
        // Predicated region
        $region69: #{tpu_custom_call.1} parent=59 // pred_check
          %p438 = pneg %p169
        $region70: #{tpu_custom_call.1} parent=59 // pred_check_branch
          %440 = sbr.rel (%p438) target = $region72
        $region71: #{tpu_custom_call.1} parent=59 // pred_region
          %441 = dma.done [#allocation10], 16
        $region72: #{tpu_custom_call.1} parent=59 // pred_fallthru
          _
        %p442 = scmp.lt.s32.totalorder %s45, 2
        %s443 = scalar_select %p442, %s45, 2
        %p444 = scmp.lt.s32.totalorder %s44, 1
        %s445 = scalar_select %p444, %s44, 1
        %s446 = smul.addr %s443, 2
        %s447 = sadd.s32 %s445, %s446
        %s448 = smul.addr %s447, 4
        %s449 = scalar_lea.vmem %s2, %s448
        %p450 = pneg %p75
        %p451 = pneg %p72
        %p452 = scmp.lt.s32.totalorder %s44, 1
        %s453 = scalar_select %p452, %s44, 1
        %s454 = smul.addr %s453, 8
        %s455 = scalar_lea.vmem %s3, %s454
        %p456 = pneg %p101
        %p457 = pneg %p98
        %s458 = sand.u32 %s114, 1
        %s459 = scalar_lea.sflag [#allocation7], %s458
        %s460 = sand.u32 %s114, 1
        %s461 = smul.addr %s460, 2
        %s462 = scalar_lea.vmem [#allocation6], %s461
        %p463 = pneg %p127
        %p464 = pneg %p124
        %p465 = pneg %p148
        %p466 = pneg %p145
        %p467 = pneg %p169
        %p468 = pneg %p166
        %p469 = pneg %p190
        %p470 = pneg %p187
        %p471 = pneg %p211
        %p472 = pneg %p208
        %p473 = pneg %p232
        %p474 = pneg %p229
        %p475 = pneg %p253
        %p476 = pneg %p250
        %p477 = pneg %p274
        %p478 = pneg %p271
        %p479 = pneg %p300
        %p480 = pneg %p297
        %s481 = sand.u32 %s287, 1
        %s482 = scalar_lea.sflag [#allocation8], %s481
        %s483 = sand.u32 %s287, 1
        %s484 = smul.addr %s483, 4
        %s485 = scalar_lea.vmem [#allocation12], %s484
        %p486 = pneg %p326
        %p487 = pneg %p323
        %s488 = sand.u32 %s313, 1
        %s489 = scalar_lea.sflag [#allocation14], %s488
        %s490 = sand.u32 %s313, 1
        %s491 = smul.addr %s490, 4
        %s492 = scalar_lea.vmem [#allocation13], %s491
        %p493 = scmp.lt.s32.totalorder %s45, 2
        %s494 = scalar_select %p493, %s45, 2
        %p495 = scmp.lt.s32.totalorder %s44, 1
        %s496 = scalar_select %p495, %s44, 1
        %s497 = smul.addr %s494, 2
        %s498 = sadd.s32 %s496, %s497
        %s499 = smul.addr %s498, 4
        %s500 = scalar_lea.vmem %s2, %s499
        %p501 = scmp.lt.s32.totalorder %s44, 1
        %s502 = scalar_select %p501, %s44, 1
        %s503 = smul.addr %s502, 8
        %s504 = scalar_lea.vmem %s3, %s503
        %v506 = vld [vmem:[%s500] sm:$0xf]
        %v507 = vunpack.c.l.bf16 %v506
        %vm508 = vcmask 261120
        %v509 = vsel %vm508, %v507, 0.0
        %510 = vadd.xlane.f32.xlu0 %v509
        %v511 = vpop.xlane.xlu0 %510
        %v512 = vrcp.pop 32.0
        %v513 = vmul.f32 %v511, %v512
        %v514 = vsub.f32 %v507, %v513
        %v515 = vmul.f32 %v514, %v514
        %v516 = vsel %vm508, %v515, 0.0
        %517 = vadd.xlane.f32.xlu0 %v516
        %v518 = vpop.xlane.xlu0 %517
        %v519 = vmul.f32 %v518, %v512
        %s520 = sld [smem:[#allocation4 + %s45]]
        %v521 = vld [vmem:[#allocation9] sm:$0x1]
        %v522 = vstv %s520
        %v523 = vmul.f32 %v522, %v521
        %v524 = vadd.f32 %v519, 1e-05
        %v525 = vrsqrt.pop %v524
        %v526 = vmul.f32 %v514, %v525
        %v528 = vlaneseq
        %v529 = vshrl.u32 %v528, 7
        %v530 = vsub.s32 0, %v529
        %v531 = vrot.slane %v523, %v530
        %v533 = vmul.f32 %v526, %v531
        %p534 = scmp.eq.s32.totalorder %s45, 0
        // Predicated region
        $region73: #{tpu_custom_call.1} parent=59 // pred_check
          %p535 = pneg %p534
        $region74: #{tpu_custom_call.1} parent=59 // pred_check_branch
          %537 = sbr.rel (%p535) target = $region76
        $region75: #{tpu_custom_call.1} parent=59 // pred_region
          %538 = vst.msk [vmem:[#allocation2] sm:$0xff] %vm508, 0.0
        $region76: #{tpu_custom_call.1} parent=59 // pred_fallthru
          _
        %v539 = vld [vmem:[#allocation2] sm:$0xff]
        %v540 = vadd.f32 %v539, %v533
        %541 = vst.msk [vmem:[#allocation2] sm:$0xff] %vm508, %v540
        %p542 = scmp.eq.s32.totalorder %s45, 2
        // Predicated region
        $region77: #{tpu_custom_call.1} parent=59 // pred_check
          %p543 = pneg %p542
        $region78: #{tpu_custom_call.1} parent=59 // pred_check_branch
          %545 = sbr.rel (%p543) target = $region80
        $region79: #{tpu_custom_call.1} parent=59 // pred_region
          %v546 = vld [vmem:[#allocation2] sm:$0xff]
          %v547 = vld [vmem:[#allocation11] sm:$0x1]
          %v549 = vlaneseq
          %v550 = vshrl.u32 %v549, 7
          %v551 = vsub.s32 0, %v550
          %v552 = vrot.slane %v547, %v551
          %v554 = vadd.f32 %v546, %v552
          %v555 = vld [vmem:[%s504] sm:$0xff]
          %vm556 = vcmp.eq.f32.partialorder %v555, 0.0
          %v557 = vsel %vm556, 1, 0
          %558 = vset.pattern.permute.xlu0 0
          %559 = vperm.xlu0 %558, %v557
          %v560 = vpop.permute.xlu0 %559
          %vm561 = vcmp.eq.s32.totalorder %v560, 1
          %v562 = vsel %vm561, 0.0, %v554
          %v563 = vld [vmem:[%s7] sm:$0x1]
          %v565 = vlaneseq
          %v566 = vshrl.u32 %v565, 7
          %v567 = vsub.s32 0, %v566
          %v568 = vrot.slane %v563, %v567
          %v570 = vmul.f32 %v562, %v568
          %v571 = vsel %vm508, %v570, 0.0
          %572 = vadd.xlane.f32.xlu0 %v571
          %v573 = vpop.xlane.xlu0 %572
          %s574 = sld [smem:[#allocation5]]
          %v575 = vstv %s574
          %v576 = vadd.f32 %v573, %v575
          %v577 = vmul.f32 %v576, 0.17677669
          %v578 = vrot.slane %v577, 4
          %v579 = vmax.f32 %v577, %v578
          %v580 = vrot.slane %v579, 2
          %v581 = vmax.f32 %v579, %v580
          %v582 = vrot.slane %v581, 1
          %v583 = vmax.f32 %v581, %v582
          %v584 = vsub.f32 %v577, %v583
          %v585 = vmul.f32 %v584, 1.442695
          %v586 = vpow.pop %v585
          %v587 = vld [vmem:[%s429] sm:$0x3]
          %v588 = vmul.f32 %v586, %v562
          %v589 = vpack.c.bf16 %v588, %v588
          %vm590 = vcmask 64512
          %v592 = vsel %vm590, %v587, 0
          %vm594 = vcmask 1043456
          %v596 = vsel %vm594, %v589, 0
          %598 = vmatprep.subr.bf16.mxu0 0
          %599 = vmatpush1.bf16.msra.mxu0 %v596
          %600 = vmatprep.subr.bf16.mxu0 0
          %601 = vmatpush1.bf16.msra.mxu0 0
          %602 = vmatprep.subr.bf16.mxu0 0
          %603 = vmatpush1.bf16.msra.mxu0 0
          %604 = vmatprep.subr.bf16.mxu0 0
          %605 = vmatpush1.bf16.msra.mxu0 0
          %606 = vmatprep.subr.bf16.mxu0 0
          %607 = vmatpush1.bf16.msra.mxu0 0
          %608 = vmatprep.subr.bf16.mxu0 0
          %609 = vmatpush1.bf16.msra.mxu0 0
          %610 = vmatprep.subr.bf16.mxu0 0
          %611 = vmatpush1.bf16.msra.mxu0 0
          %612 = vmatprep.subr.bf16.mxu0 0
          %613 = vmatpush1.bf16.msra.mxu0 0
          %614 = vmatprep.subr.bf16.mxu0 0
          %615 = vmatpush1.bf16.msra.mxu0 0
          %616 = vmatprep.subr.bf16.mxu0 0
          %617 = vmatpush1.bf16.msra.mxu0 0
          %618 = vmatprep.subr.bf16.mxu0 0
          %619 = vmatpush1.bf16.msra.mxu0 0
          %620 = vmatprep.subr.bf16.mxu0 0
          %621 = vmatpush1.bf16.msra.mxu0 0
          %622 = vmatprep.subr.bf16.mxu0 0
          %623 = vmatpush1.bf16.msra.mxu0 0
          %624 = vmatprep.subr.bf16.mxu0 0
          %625 = vmatpush1.bf16.msra.mxu0 0
          %626 = vmatprep.subr.bf16.mxu0 0
          %627 = vmatpush1.bf16.msra.mxu0 0
          %628 = vmatprep.subr.bf16.mxu0 0
          %629 = vmatpush1.bf16.msra.mxu0 0
          %630 = vmatprep.mubr.bf16.mxu0 0
          %631 = vmatmul.mubr.bf16.gmra.mrb[0].mxu0 %v592
          %v632 = vpop.f32.mrb[0].mxu0
          %v633 = vadd.f32 0.0, %v632
          %v634 = vpop.f32.mrb[0].mxu0
          %v635 = vpop.f32.mrb[0].mxu0
          %v636 = vpop.f32.mrb[0].mxu0
          %637 = vdwg.mxu0
          %v638 = vunpack.c.l.bf16 %v587
          %v640 = vsel %vm590, %v638, 0
          %642 = vmatprep.subr.mxu0 0.0
          %643 = vmatpush1.msra.mxu0 %v586
          %644 = vmatprep.subr.mxu0 0.0
          %645 = vmatpush1.msra.mxu0 0.0
          %646 = vmatprep.subr.mxu0 0.0
          %647 = vmatpush1.msra.mxu0 0.0
          %648 = vmatprep.subr.mxu0 0.0
          %649 = vmatpush1.msra.mxu0 0.0
          %650 = vmatprep.subr.mxu0 0.0
          %651 = vmatpush1.msra.mxu0 0.0
          %652 = vmatprep.subr.mxu0 0.0
          %653 = vmatpush1.msra.mxu0 0.0
          %654 = vmatprep.subr.mxu0 0.0
          %655 = vmatpush1.msra.mxu0 0.0
          %656 = vmatprep.subr.mxu0 0.0
          %657 = vmatpush1.msra.mxu0 0.0
          %658 = vmatprep.subr.mxu0 0.0
          %659 = vmatpush1.msra.mxu0 0.0
          %660 = vmatprep.subr.mxu0 0.0
          %661 = vmatpush1.msra.mxu0 0.0
          %662 = vmatprep.subr.mxu0 0.0
          %663 = vmatpush1.msra.mxu0 0.0
          %664 = vmatprep.subr.mxu0 0.0
          %665 = vmatpush1.msra.mxu0 0.0
          %666 = vmatprep.subr.mxu0 0.0
          %667 = vmatpush1.msra.mxu0 0.0
          %668 = vmatprep.subr.mxu0 0.0
          %669 = vmatpush1.msra.mxu0 0.0
          %670 = vmatprep.subr.mxu0 0.0
          %671 = vmatpush1.msra.mxu0 0.0
          %672 = vmatprep.subr.mxu0 0.0
          %673 = vmatpush1.msra.mxu0 0.0
          %674 = vmatprep.subr.mxu0 0.0
          %675 = vmatpush1.msra.mxu0 0.0
          %676 = vmatprep.subr.mxu0 0.0
          %677 = vmatpush1.msra.mxu0 0.0
          %678 = vmatprep.subr.mxu0 0.0
          %679 = vmatpush1.msra.mxu0 0.0
          %680 = vmatprep.subr.mxu0 0.0
          %681 = vmatpush1.msra.mxu0 0.0
          %682 = vmatprep.subr.mxu0 0.0
          %683 = vmatpush1.msra.mxu0 0.0
          %684 = vmatprep.subr.mxu0 0.0
          %685 = vmatpush1.msra.mxu0 0.0
          %686 = vmatprep.subr.mxu0 0.0
          %687 = vmatpush1.msra.mxu0 0.0
          %688 = vmatprep.subr.mxu0 0.0
          %689 = vmatpush1.msra.mxu0 0.0
          %690 = vmatprep.subr.mxu0 0.0
          %691 = vmatpush1.msra.mxu0 0.0
          %692 = vmatprep.subr.mxu0 0.0
          %693 = vmatpush1.msra.mxu0 0.0
          %694 = vmatprep.subr.mxu0 0.0
          %695 = vmatpush1.msra.mxu0 0.0
          %696 = vmatprep.subr.mxu0 0.0
          %697 = vmatpush1.msra.mxu0 0.0
          %698 = vmatprep.subr.mxu0 0.0
          %699 = vmatpush1.msra.mxu0 0.0
          %700 = vmatprep.subr.mxu0 0.0
          %701 = vmatpush1.msra.mxu0 0.0
          %702 = vmatprep.subr.mxu0 0.0
          %703 = vmatpush1.msra.mxu0 0.0
          %704 = vmatprep.subr.mxu0 0.0
          %705 = vmatpush1.msra.mxu0 0.0
          %706 = vmatprep.mubr.f32.mxu0 0.0
          %707 = vmatmul.mubr.f32.gmra.mrb[0].mxu0 %v640
          %v708 = vpop.f32.mrb[0].mxu0
          %v709 = vadd.f32 0.0, %v708
          %v710 = vpop.f32.mrb[0].mxu0
          %711 = vdwg.mxu0
          %vm712 = vcmp.eq.f32.partialorder %v709, 0.0
          %v713 = vsel %vm712, 1.0, %v709
          %v714 = vrcp.pop %v713
          %716 = vset.pattern.permute.xlu0 0
          %717 = vperm.xlu0 %716, %v714
          %v718 = vpop.permute.xlu0 %717
          %v720 = vmul.f32 %v633, %v718
          %v721 = vld [vmem:[%s8] sm:$0x1]
          %v722 = vld [vmem:[%s9] sm:$0x1]
          %vm723 = vcmask 257024
          %v724 = vsel %vm723, %v720, 0.0
          %725 = vadd.xlane.f32.xlu0 %v724
          %v726 = vpop.xlane.xlu0 %725
          %v727 = vmul.f32 %v726, %v512
          %v728 = vsub.f32 %v720, %v727
          %v729 = vmul.f32 %v728, %v728
          %v730 = vsel %vm723, %v729, 0.0
          %731 = vadd.xlane.f32.xlu0 %v730
          %v732 = vpop.xlane.xlu0 %731
          %v733 = vmul.f32 %v732, %v512
          %v734 = vadd.f32 %v733, 1e-05
          %v735 = vrsqrt.pop %v734
          %v736 = vmul.f32 %v728, %v735
          %v738 = vlaneseq
          %v739 = vshrl.u32 %v738, 7
          %v740 = vsub.s32 0, %v739
          %v741 = vrot.slane %v721, %v740
          %v743 = vmul.f32 %v736, %v741
          %v745 = vlaneseq
          %v746 = vshrl.u32 %v745, 7
          %v747 = vsub.s32 0, %v746
          %v748 = vrot.slane %v722, %v747
          %v750 = vadd.f32 %v743, %v748
          %751 = vst.msk [vmem:[%s485] sm:$0xf] %vm723, %v750
          %v752 = vpack.c.bf16 %v750, %v750
          %v753 = vld [vmem:[%s10] sm:$0xf]
          %v754 = vld [vmem:[%s10 + $0x4] sm:$0xf]
          %v755 = vld [vmem:[%s10 + $0x8] sm:$0xf]
          %v756 = vld [vmem:[%s10 + $0xc] sm:$0xf]
          %v757 = vld [vmem:[%s11] sm:$0x1]
          %v759 = vlaneseq
          %v760 = vshrl.u32 %v759, 7
          %v761 = vsub.s32 0, %v760
          %v762 = vrot.slane %v757, %v761
          %v768 = vunpack.c.l.b16 %v753
          %v769 = vunpack.c.l.b16 %v754
          %v770 = vunpack.c.l.b16 %v755
          %v771 = vunpack.c.l.b16 %v756
          %v772 = vpack.c.b16 %v769, %v768
          %v773 = vpack.c.b16 %v771, %v770
          %v777 = vsel %vm508, %v752, 0
          %779 = vmatprep.subr.bf16.mxu0 0
          %780 = vmatpush1.bf16.msra.mxu0 %v772
          %781 = vmatprep.subr.bf16.mxu0 0
          %782 = vmatpush1.bf16.msra.mxu0 %v773
          %783 = vmatprep.subr.bf16.mxu0 0
          %784 = vmatpush1.bf16.msra.mxu0 0
          %785 = vmatprep.subr.bf16.mxu0 0
          %786 = vmatpush1.bf16.msra.mxu0 0
          %787 = vmatprep.subr.bf16.mxu0 0
          %788 = vmatpush1.bf16.msra.mxu0 0
          %789 = vmatprep.subr.bf16.mxu0 0
          %790 = vmatpush1.bf16.msra.mxu0 0
          %791 = vmatprep.subr.bf16.mxu0 0
          %792 = vmatpush1.bf16.msra.mxu0 0
          %793 = vmatprep.subr.bf16.mxu0 0
          %794 = vmatpush1.bf16.msra.mxu0 0
          %795 = vmatprep.subr.bf16.mxu0 0
          %796 = vmatpush1.bf16.msra.mxu0 0
          %797 = vmatprep.subr.bf16.mxu0 0
          %798 = vmatpush1.bf16.msra.mxu0 0
          %799 = vmatprep.subr.bf16.mxu0 0
          %800 = vmatpush1.bf16.msra.mxu0 0
          %801 = vmatprep.subr.bf16.mxu0 0
          %802 = vmatpush1.bf16.msra.mxu0 0
          %803 = vmatprep.subr.bf16.mxu0 0
          %804 = vmatpush1.bf16.msra.mxu0 0
          %805 = vmatprep.subr.bf16.mxu0 0
          %806 = vmatpush1.bf16.msra.mxu0 0
          %807 = vmatprep.subr.bf16.mxu0 0
          %808 = vmatpush1.bf16.msra.mxu0 0
          %809 = vmatprep.subr.bf16.mxu0 0
          %810 = vmatpush1.bf16.msra.mxu0 0
          %811 = vmatprep.mubr.bf16.mxu0 0
          %812 = vmatmul.mubr.bf16.gmra.mrb[0].mxu0 %v777
          %v813 = vpop.f32.mrb[0].mxu0
          %v814 = vadd.f32 %v762, %v813
          %v815 = vpop.f32.mrb[0].mxu0
          %v816 = vpop.f32.mrb[0].mxu0
          %v817 = vpop.f32.mrb[0].mxu0
          %818 = vdwg.mxu0
          %vm819 = vcmask 519168
          %820 = vst.msk [vmem:[%s492] sm:$0xf] %vm819, %v814
        $region80: #{tpu_custom_call.1} parent=59 // pred_fallthru
          _
        %s821 = sand.u32 %s287, 1
        %s822 = scalar_lea.sflag [#allocation8], %s821
        %s823 = sand.u32 %s287, 1
        %s824 = smul.addr %s823, 4
        %s825 = scalar_lea.vmem [#allocation12], %s824
        %s826 = sand.u32 %s313, 1
        %s827 = scalar_lea.sflag [#allocation14], %s826
        %s828 = sand.u32 %s313, 1
        %s829 = smul.addr %s828, 4
        %s830 = scalar_lea.vmem [#allocation13], %s829
        // Predicated region
        $region81: #{tpu_custom_call.1} parent=59 // pred_check
          %p831 = pneg %p297
        $region82: #{tpu_custom_call.1} parent=59 // pred_check_branch
          %833 = sbr.rel (%p831) target = $region84
        $region83: #{tpu_custom_call.1} parent=59 // pred_region
          %s835 = ssub.s32 64, 64
          %836 = vsyncadd %s822, %s835
          %s837 = smul.addr %s44, 64
          %s838 = scalar_lea.hbm %s12, %s837
          %s840 = sshll.u32 %s825, 4
          %s841 = int_to_ptr.vmem [resolvable:$true] %s840
          %843 = dma.vmem_to_hbm [thread:$0]  %s841, 64, %s838, %s822
        $region84: #{tpu_custom_call.1} parent=59 // pred_fallthru
          _
        // Predicated region
        $region85: #{tpu_custom_call.1} parent=59 // pred_check
          %p844 = pneg %p323
        $region86: #{tpu_custom_call.1} parent=59 // pred_check_branch
          %846 = sbr.rel (%p844) target = $region88
        $region87: #{tpu_custom_call.1} parent=59 // pred_region
          %s848 = ssub.s32 64, 64
          %849 = vsyncadd %s827, %s848
          %s850 = smul.addr %s44, 64
          %s851 = scalar_lea.hbm %s13, %s850
          %s853 = sshll.u32 %s830, 4
          %s854 = int_to_ptr.vmem [resolvable:$true] %s853
          %856 = dma.vmem_to_hbm [thread:$0]  %s854, 64, %s851, %s827
        $region88: #{tpu_custom_call.1} parent=59 // pred_fallthru
          _
      $region60: #{tpu_custom_call.1} parent=5 // pred_fallthru
        _
      %p857 = scmp.le.s32.totalorder 2, %s35
      // Predicated region
      $region89: #{tpu_custom_call.1} parent=5 // pred_check
        %p858 = pneg %p857
      $region90: #{tpu_custom_call.1} parent=5 // pred_check_branch
        %860 = sbr.rel (%p858) target = $region92
      $region91: #{tpu_custom_call.1} parent=5 // pred_region
        %s861 = ssub.s32 %s35, 2
        // Predicated region
        $region93: #{tpu_custom_call.1} parent=91 // pred_check
          %p862 = pneg %p303
        $region94: #{tpu_custom_call.1} parent=91 // pred_check_branch
          %864 = sbr.rel (%p862) target = $region96
        $region95: #{tpu_custom_call.1} parent=91 // pred_region
          %s865 = sand.u32 %s288, 1
          %s866 = scalar_lea.sflag [#allocation8], %s865
          %s867 = sand.u32 %s288, 1
          %s868 = smul.addr %s867, 4
          %s869 = scalar_lea.vmem [#allocation12], %s868
          %870 = dma.done %s866, 64
        $region96: #{tpu_custom_call.1} parent=91 // pred_fallthru
          _
        // Predicated region
        $region97: #{tpu_custom_call.1} parent=91 // pred_check
          %p871 = pneg %p329
        $region98: #{tpu_custom_call.1} parent=91 // pred_check_branch
          %873 = sbr.rel (%p871) target = $region100
        $region99: #{tpu_custom_call.1} parent=91 // pred_region
          %s874 = sand.u32 %s314, 1
          %s875 = scalar_lea.sflag [#allocation14], %s874
          %s876 = sand.u32 %s314, 1
          %s877 = smul.addr %s876, 4
          %s878 = scalar_lea.vmem [#allocation13], %s877
          %879 = dma.done %s875, 64
        $region100: #{tpu_custom_call.1} parent=91 // pred_fallthru
          _
      $region92: #{tpu_custom_call.1} parent=5 // pred_fallthru
        _
    $region6: #{tpu_custom_call.1} parent=1 // loop_footer
      %s39 = sadd.s32 1, %s35
    $region7: #{tpu_custom_call.1} parent=1 // loop_footer_branch
      %34 = sbr.rel target = $region3
    $region8: #{tpu_custom_call.1} parent=1 // loop_exit
      _
    %880 = vsyncpa [#allocation7], 1
    %s881 = scalar_lea.sflag [#allocation7], 1
    %882 = vsyncpa %s881, 1
    %883 = vsyncpa [#allocation10], 1
    %884 = vsyncpa [#allocation8], 1
    %s885 = scalar_lea.sflag [#allocation8], 1
    %886 = vsyncpa %s885, 1
    %887 = vsyncpa [#allocation14], 1
    %s888 = scalar_lea.sflag [#allocation14], 1
    %889 = vsyncpa %s888, 1

</llo_original>
